<compile_context>
chip_gen: v7x
topology: tpu7x:2x2x1
jax: 0.10.0
libtpu: 0.0.40
codegen_flags: <defaults>
</compile_context>

<pallas_src>
import jax
import jax.numpy as jnp
from jax.experimental import pallas as pl
from jax.experimental.pallas import tpu as pltpu


def _round_up(x: int, m: int) -> int:
    return (x + m - 1) // m * m


def _plan_time_block(S, B, I, I_pad, H_pad, L, x_bytes, cdt_bytes, out_bytes,
                     budget_bytes=20 << 20, max_t_cap=512):
    """Pick the time block T (multiple of 8) from a VMEM budget; return
    (T, S_pad, vmem_estimate_bytes)."""
    per_t = (2 * B * I * x_bytes              # x block (double-buffered)
             + 2 * B * H_pad * out_bytes      # out block (double-buffered)
             + B * I_pad * cdt_bytes          # xp scratch
             + B * H_pad * 4                  # u scratch (f32)
             + (B * H_pad * cdt_bytes if L > 1 else 0)   # h scratch
             + H_pad * 4)                     # vb scratch
    fixed = (2 * (I_pad * H_pad * cdt_bytes
                  + (L - 1) * H_pad * H_pad * cdt_bytes
                  + L * H_pad * H_pad * 4
                  + L * 8 * H_pad * 4)        # weights/bias, double-buffered
             + L * max(B, 8) * H_pad * 4      # hfin (resident)
             + L * 8 * H_pad * 4)             # rows scratch
    avail = max(budget_bytes - fixed, 8 * per_t)
    max_t = max(8, min(max_t_cap, (avail // per_t) // 8 * 8))
    T = min(max_t, _round_up(S, 8))
    S_pad = _round_up(S, T)
    return T, S_pad, fixed + per_t * T


def _make_rnn_kernel(num_layers, tb_last, t_fin, unroll):
    has_deep = num_layers > 1

    def kernel(*refs):
        it = iter(refs)
        x_ref = next(it)          # (B, T, I)            input dtype (f32)
        w0t_ref = next(it)        # (I_pad, H_pad)       cdt, W0^T (zero-padded)
        wrt_ref = next(it) if has_deep else None  # (L-1, H_pad, H_pad) cdt, Wl^T
        vt_ref = next(it)         # (L, H_pad, H_pad)    f32, Vl^T
        b_ref = next(it)          # (L, 1, H_pad)        f32
        out_ref = next(it)        # (B, T, H_pad)        out dtype
        hfin_ref = next(it)       # (L, B, H_pad)        f32 (resident across grid)
        xp_ref = next(it)         # (B, T, I_pad)        cdt scratch (lane-padded x)
        u_ref = next(it)          # (B, T, H_pad)        f32 scratch (projection slab)
        h_ref = next(it) if has_deep else None    # (B, T, H_pad) cdt scratch
        vb_ref = next(it)         # (T, H_pad)           f32 scratch (per-t recurrent vec)
        rows_ref = next(it)       # (L, 1, H_pad)        f32 scratch (carried quirk rows)

        tb = pl.program_id(0)
        B, T, I = x_ref.shape
        I_pad = xp_ref.shape[-1]
        H_pad = vt_ref.shape[-1]

        @pl.when(tb == 0)
        def _init():
            rows_ref[...] = jnp.zeros_like(rows_ref)   # h_0 = 0
            xp_ref[...] = jnp.zeros_like(xp_ref)       # zero padding lanes once

        # Lane-pad + cast the input block inside VMEM (x stays narrow in HBM).
        xp_ref[:, :, :I] = x_ref[...].astype(xp_ref.dtype)

        for l in range(num_layers):
            # (1) One big MXU matmul for the whole (batch*time) slab of layer l.
            if l == 0:
                lhs = xp_ref[...].reshape(B * T, I_pad)
                rhs = w0t_ref[...]
            else:
                lhs = h_ref[...].reshape(B * T, H_pad)
                rhs = wrt_ref[l - 1]
            u_ref[...] = jnp.dot(
                lhs, rhs, preferred_element_type=jnp.float32
            ).reshape(B, T, H_pad)

            # (2) Serial part: tiny f32 (1, H) row recurrence.  The quirky
            #     V[l] @ h_prev[l] term only involves batch row `l`, so it is a
            #     batch-invariant vector vb(t) saved for the slab pass.
            vt_l = vt_ref[l]            # (H_pad, H_pad) f32, hoisted out of loop
            b_l = b_ref[l]              # (1, H_pad)     f32

            def step(t, row, _l=l, _vt=vt_l, _b=b_l):
                vb = jnp.dot(row, _vt, preferred_element_type=jnp.float32) + _b
                vb_ref[pl.ds(t, 1), :] = vb
                return jnp.tanh(u_ref[_l, pl.ds(t, 1), :] + vb)

            rows_ref[l] = jax.lax.fori_loop(0, T, step, rows_ref[l],
                                            unroll=unroll)

            # (3) Parallel part: broadcast vb(t) over the batch and tanh the
            #     whole (B, T, H_pad) slab at once.
            h_slab = jnp.tanh(u_ref[...] + vb_ref[...][None, :, :])
            if l == num_layers - 1:
                out_ref[...] = h_slab.astype(out_ref.dtype)
            else:
                h_ref[...] = h_slab.astype(h_ref.dtype)

            # Final hidden state: written once, in the block holding t = S-1.
            @pl.when(tb == tb_last)
            def _final(_l=l, _h=h_slab):
                hfin_ref[_l] = _h[:, t_fin, :]

    return kernel


def vanilla_rnn_forward(x, Ws, Vs, bs, *, compute_dtype=jnp.bfloat16,
                        out_dtype=jnp.float32):
    """x: (B, S, I) or (S, I). Returns (output (B, S, H), h_final (L, B, H))."""
    if x.ndim == 2:
        x = x[None]
    B, S, I = x.shape
    L = len(Ws)
    H = Ws[0].shape[0]
    if L > B:
        # The reference module indexes h_prev[layer]; PyTorch raises here too.
        raise ValueError(f"num_layers ({L}) must be <= batch ({B}) for this module")

    cdt = compute_dtype
    H_pad = _round_up(H, 128)
    I_pad = _round_up(I, 128)

    x_bytes = jnp.dtype(x.dtype).itemsize
    cdt_bytes = jnp.dtype(cdt).itemsize
    out_bytes = jnp.dtype(out_dtype).itemsize
    T, S_pad, vmem_est = _plan_time_block(S, B, I, I_pad, H_pad, L,
                                          x_bytes, cdt_bytes, out_bytes)
    num_blocks = S_pad // T
    tb_last = (S - 1) // T
    t_fin = (S - 1) - tb_last * T
    unroll = int(min(T, 8 if H_pad <= 1024 else 4))

    if S_pad != S:
        x = jnp.pad(x, ((0, 0), (0, S_pad - S), (0, 0)))

    # Transposed (for x @ W^T as plain dots), zero-padded, stacked weights.
    w0t = jnp.zeros((I_pad, H_pad), cdt).at[:I, :H].set(Ws[0].T.astype(cdt))
    operands = [x, w0t]
    in_specs = [pl.BlockSpec((B, T, I), lambda tb: (0, tb, 0)),
                pl.BlockSpec((I_pad, H_pad), lambda tb: (0, 0))]
    if L > 1:
        wrt = jnp.zeros((L - 1, H_pad, H_pad), cdt)
        for l in range(1, L):
            wrt = wrt.at[l - 1, :H, :H].set(Ws[l].T.astype(cdt))
        operands.append(wrt)
        in_specs.append(pl.BlockSpec((L - 1, H_pad, H_pad), lambda tb: (0, 0, 0)))
    vt = jnp.zeros((L, H_pad, H_pad), jnp.float32)       # f32: row recurrence stays f32
    for l in range(L):
        vt = vt.at[l, :H, :H].set(Vs[l].T.astype(jnp.float32))
    b_all = jnp.zeros((L, 1, H_pad), jnp.float32)
    for l in range(L):
        b_all = b_all.at[l, 0, :H].set(bs[l].astype(jnp.float32))
    operands += [vt, b_all]
    in_specs += [pl.BlockSpec((L, H_pad, H_pad), lambda tb: (0, 0, 0)),
                 pl.BlockSpec((L, 1, H_pad), lambda tb: (0, 0, 0))]

    out_specs = (pl.BlockSpec((B, T, H_pad), lambda tb: (0, tb, 0)),
                 pl.BlockSpec((L, B, H_pad), lambda tb: (0, 0, 0)))
    out_shape = (jax.ShapeDtypeStruct((B, S_pad, H_pad), out_dtype),
                 jax.ShapeDtypeStruct((L, B, H_pad), jnp.float32))

    scratch_shapes = [pltpu.VMEM((B, T, I_pad), cdt),          # lane-padded x
                      pltpu.VMEM((B, T, H_pad), jnp.float32)]  # projection slab U
    if L > 1:
        scratch_shapes.append(pltpu.VMEM((B, T, H_pad), cdt))  # layer output slab
    scratch_shapes += [pltpu.VMEM((T, H_pad), jnp.float32),    # vb(t) vectors
                       pltpu.VMEM((L, 1, H_pad), jnp.float32)] # carried quirk rows

    vmem_limit = int(min(64 << 20, max(32 << 20, 2 * vmem_est)))

    out_pad, h_final = pl.pallas_call(
        _make_rnn_kernel(L, tb_last, t_fin, unroll),
        grid=(num_blocks,),
        in_specs=in_specs,
        out_specs=out_specs,
        out_shape=out_shape,
        scratch_shapes=scratch_shapes,
        compiler_params=pltpu.CompilerParams(
            dimension_semantics=("arbitrary",),    # true time recurrence
            vmem_limit_bytes=vmem_limit),
    )(*operands)

    return out_pad[:, :S, :H], h_final[:, :, :H]


def vanilla_rnn_reference(x, Ws, Vs, bs):
    """Pure-JAX f32 transcription of the PyTorch forward (quirk included)."""
    if x.ndim == 2:
        x = x[None]
    B, S, _ = x.shape
    L = len(Ws)
    H = Ws[0].shape[0]
    h_t = jnp.zeros((L, B, H), jnp.float32)
    outs = []
    for t in range(S):
        x_t = x[:, t, :]
        new_h = []
        for layer in range(L):
            h_prev = h_t[layer]
            h_curr = jnp.tanh(x_t @ Ws[layer].T + Vs[layer] @ h_prev[layer] + bs[layer])
            new_h.append(h_curr)
            x_t = h_curr
        h_t = jnp.stack(new_h, 0)
        outs.append(h_t[-1])
    return jnp.stack(outs, 1), h_t


if __name__ == "__main__":
    # Small shapes consistent with the module: (batch, seq_len, input_size)
    batch, seq_len, input_size, hidden_size = 2, 8, 4, 32

    def make_params(key, num_layers):
        ks = jax.random.split(key, 3 * num_layers)
        Ws, Vs, bs = [], [], []
        for i in range(num_layers):
            in_dim = input_size if i == 0 else hidden_size
            Ws.append(jax.random.normal(ks[3 * i + 0], (hidden_size, in_dim), jnp.float32))
            Vs.append(jax.random.normal(ks[3 * i + 1], (hidden_size, hidden_size), jnp.float32))
            bs.append(jax.random.normal(ks[3 * i + 2], (hidden_size,), jnp.float32))
        return Ws, Vs, bs

    key = jax.random.PRNGKey(0)
    kx, kp1, kp2 = jax.random.split(key, 3)
    x = jax.random.normal(kx, (batch, seq_len, input_size), jnp.float32)

    for num_layers, kp in ((1, kp1), (2, kp2)):
        Ws, Vs, bs = make_params(kp, num_layers)
        ref_out, ref_h = vanilla_rnn_reference(x, Ws, Vs, bs)

        # Exactness check: f32 operands (same math as the reference).
        out32, h32 = vanilla_rnn_forward(x, Ws, Vs, bs,
                                         compute_dtype=jnp.float32,
                                         out_dtype=jnp.float32)
        jax.block_until_ready((out32, h32))
        assert out32.shape == (batch, seq_len, hidden_size)
        assert h32.shape == (num_layers, batch, hidden_size)
        assert jnp.allclose(out32, ref_out, atol=1e-4, rtol=1e-4)
        assert jnp.allclose(h32, ref_h, atol=1e-4, rtol=1e-4)

        # Production path: bf16 MXU operands / bf16 output with f32 accumulation
        # and an f32 row recurrence.  bf16 rounding compounds through the tanh
        # recurrence, so validate with a mean-absolute-error bound (a
        # mis-indexed kernel would give MAE ~O(1)).
        out_bf, h_bf = vanilla_rnn_forward(x, Ws, Vs, bs,
                                           compute_dtype=jnp.bfloat16,
                                           out_dtype=jnp.bfloat16)
        jax.block_until_ready((out_bf, h_bf))
        out_bf32 = out_bf.astype(jnp.float32)
        assert bool(jnp.all(jnp.isfinite(out_bf32))) and bool(jnp.all(jnp.isfinite(h_bf)))
        assert float(jnp.mean(jnp.abs(out_bf32 - ref_out))) < 5e-2
        assert float(jnp.mean(jnp.abs(h_bf - ref_h))) < 5e-2

    print("KERNEL_OK")
</pallas_src>

<mosaic_0001>
module attributes {stable_mosaic.version = 11 : i64} {
  func.func @kernel(%arg0: i32, %arg1: memref<2x8x4xf32, #tpu.memory_space<vmem>>, %arg2: memref<128x128xf32, #tpu.memory_space<vmem>>, %arg3: memref<1x128x128xf32, #tpu.memory_space<vmem>>, %arg4: memref<1x1x128xf32, #tpu.memory_space<vmem>>, %arg5: memref<2x8x128xf32, #tpu.memory_space<vmem>>, %arg6: memref<1x2x128xf32, #tpu.memory_space<vmem>>, %arg7: memref<2x8x128xf32, #tpu.memory_space<vmem>>, %arg8: memref<2x8x128xf32, #tpu.memory_space<vmem>>, %arg9: memref<8x128xf32, #tpu.memory_space<vmem>>, %arg10: memref<1x1x128xf32, #tpu.memory_space<vmem>>) attributes {dimension_semantics = [#tpu.dimension_semantics<arbitrary>], iteration_bounds = array<i64: 1>, scalar_prefetch = 0 : i64, scratch_operands = 4 : i64, tpu.core_type = #tpu.core_type<tc>, window_params = [{transform_indices = @transform_0, window_bounds = array<i64: 2, 8, 4>}, {pipeline_mode = #tpu.pipeline_mode<synchronous>, transform_indices = @transform_1, window_bounds = array<i64: 128, 128>}, {pipeline_mode = #tpu.pipeline_mode<synchronous>, transform_indices = @transform_2, window_bounds = array<i64: 1, 128, 128>}, {pipeline_mode = #tpu.pipeline_mode<synchronous>, transform_indices = @transform_3, window_bounds = array<i64: 1, 1, 128>}, {transform_indices = @transform_4, window_bounds = array<i64: 2, 8, 128>}, {pipeline_mode = #tpu.pipeline_mode<synchronous>, transform_indices = @transform_5, window_bounds = array<i64: 1, 2, 128>}]} {
    %c0_i32 = arith.constant 0 : i32
    %0 = arith.cmpi eq, %arg0, %c0_i32 : i32
    %1 = arith.extui %0 : i1 to i32
    %c0_i32_0 = arith.constant 0 : i32
    %2 = arith.cmpi ne, %1, %c0_i32_0 : i32
    scf.if %2 {
      %cst_69 = arith.constant 0.000000e+00 : f32
      %102 = vector.broadcast %cst_69 : f32 to vector<1x1x128xf32>
      %c0_70 = arith.constant 0 : index
      %c0_71 = arith.constant 0 : index
      %c0_72 = arith.constant 0 : index
      %103 = vector.load %arg10[%c0_70, %c0_71, %c0_72] : memref<1x1x128xf32, #tpu.memory_space<vmem>>, vector<1x1x128xf32>
      tpu.vector_store %arg10[%c0_70, %c0_71, %c0_72], %102 {strides = array<i32>} : memref<1x1x128xf32, #tpu.memory_space<vmem>>, vector<1x1x128xf32>,
      %cst_73 = arith.constant 0.000000e+00 : f32
      %104 = vector.broadcast %cst_73 : f32 to vector<2x8x128xf32>
      %c0_74 = arith.constant 0 : index
      %c0_75 = arith.constant 0 : index
      %c0_76 = arith.constant 0 : index
      %105 = vector.load %arg7[%c0_74, %c0_75, %c0_76] : memref<2x8x128xf32, #tpu.memory_space<vmem>>, vector<2x8x128xf32>
      tpu.vector_store %arg7[%c0_74, %c0_75, %c0_76], %104 {strides = array<i32>} : memref<2x8x128xf32, #tpu.memory_space<vmem>>, vector<2x8x128xf32>,
    } else {
    }
    %c0 = arith.constant 0 : index
    %c0_1 = arith.constant 0 : index
    %c0_2 = arith.constant 0 : index
    %3 = vector.load %arg1[%c0, %c0_1, %c0_2] : memref<2x8x4xf32, #tpu.memory_space<vmem>>, vector<2x8x4xf32>
    %c0_3 = arith.constant 0 : index
    %c0_4 = arith.constant 0 : index
    %c0_5 = arith.constant 0 : index
    %4 = vector.load %arg7[%c0_3, %c0_4, %c0_5] : memref<2x8x128xf32, #tpu.memory_space<vmem>>, vector<2x8x4xf32>
    tpu.vector_store %arg7[%c0_3, %c0_4, %c0_5], %3 {strides = array<i32>} : memref<2x8x128xf32, #tpu.memory_space<vmem>>, vector<2x8x4xf32>,
    %c0_6 = arith.constant 0 : index
    %c0_7 = arith.constant 0 : index
    %c0_8 = arith.constant 0 : index
    %5 = vector.load %arg7[%c0_6, %c0_7, %c0_8] : memref<2x8x128xf32, #tpu.memory_space<vmem>>, vector<2x8x128xf32>
    %6 = vector.shape_cast %5 : vector<2x8x128xf32> to vector<16x128xf32>
    %c0_9 = arith.constant 0 : index
    %c0_10 = arith.constant 0 : index
    %7 = vector.load %arg2[%c0_9, %c0_10] : memref<128x128xf32, #tpu.memory_space<vmem>>, vector<128x128xf32>
    %cst = arith.constant dense<0.000000e+00> : vector<16x128xf32>
    %8 = tpu.matmul %6, %7, %cst {dimension_numbers = #tpu.dot_dimension_numbers<[1], [0], [0], [1], [0, 0, 1, 1], [], []>} : vector<16x128xf32>, vector<128x128xf32>, vector<16x128xf32> -> vector<16x128xf32>
    %9 = vector.shape_cast %8 : vector<16x128xf32> to vector<2x8x128xf32>
    %c0_11 = arith.constant 0 : index
    %c0_12 = arith.constant 0 : index
    %c0_13 = arith.constant 0 : index
    %10 = vector.load %arg8[%c0_11, %c0_12, %c0_13] : memref<2x8x128xf32, #tpu.memory_space<vmem>>, vector<2x8x128xf32>
    tpu.vector_store %arg8[%c0_11, %c0_12, %c0_13], %9 {strides = array<i32>} : memref<2x8x128xf32, #tpu.memory_space<vmem>>, vector<2x8x128xf32>,
    %c0_14 = arith.constant 0 : index
    %c0_15 = arith.constant 0 : index
    %c0_16 = arith.constant 0 : index
    %11 = vector.load %arg3[%c0_14, %c0_15, %c0_16] : memref<1x128x128xf32, #tpu.memory_space<vmem>>, vector<1x128x128xf32>
    %12 = vector.shape_cast %11 : vector<1x128x128xf32> to vector<128x128xf32>
    %c0_17 = arith.constant 0 : index
    %c0_18 = arith.constant 0 : index
    %c0_19 = arith.constant 0 : index
    %13 = vector.load %arg4[%c0_17, %c0_18, %c0_19] : memref<1x1x128xf32, #tpu.memory_space<vmem>>, vector<1x1x128xf32>
    %14 = vector.shape_cast %13 : vector<1x1x128xf32> to vector<1x128xf32>
    %c0_20 = arith.constant 0 : index
    %c0_21 = arith.constant 0 : index
    %c0_22 = arith.constant 0 : index
    %15 = vector.load %arg10[%c0_20, %c0_21, %c0_22] : memref<1x1x128xf32, #tpu.memory_space<vmem>>, vector<1x1x128xf32>
    %16 = vector.shape_cast %15 : vector<1x1x128xf32> to vector<1x128xf32>
    %c0_i32_23 = arith.constant 0 : i32
    %cst_24 = arith.constant dense<0.000000e+00> : vector<1x128xf32>
    %17 = tpu.matmul %16, %12, %cst_24 {dimension_numbers = #tpu.dot_dimension_numbers<[1], [0], [0], [1], [0, 0, 1, 1], [], []>} : vector<1x128xf32>, vector<128x128xf32>, vector<1x128xf32> -> vector<1x128xf32>
    %18 = arith.addf %17, %14 : vector<1x128xf32>
    %19 = arith.index_cast %c0_i32_23 : i32 to index
    %c0_25 = arith.constant 0 : index
    %20 = vector.load %arg9[%19, %c0_25] : memref<8x128xf32, #tpu.memory_space<vmem>>, vector<1x128xf32>
    tpu.vector_store %arg9[%19, %c0_25], %18 {strides = array<i32>} : memref<8x128xf32, #tpu.memory_space<vmem>>, vector<1x128xf32>,
    %c0_26 = arith.constant 0 : index
    %21 = arith.index_cast %c0_i32_23 : i32 to index
    %c0_27 = arith.constant 0 : index
    %22 = vector.load %arg8[%c0_26, %21, %c0_27] : memref<2x8x128xf32, #tpu.memory_space<vmem>>, vector<1x1x128xf32>
    %23 = vector.shape_cast %22 : vector<1x1x128xf32> to vector<1x128xf32>
    %24 = arith.addf %23, %18 : vector<1x128xf32>
    %25 = math.tanh %24 : vector<1x128xf32>
    %c1_i32 = arith.constant 1 : i32
    %cst_28 = arith.constant dense<0.000000e+00> : vector<1x128xf32>
    %26 = tpu.matmul %25, %12, %cst_28 {dimension_numbers = #tpu.dot_dimension_numbers<[1], [0], [0], [1], [0, 0, 1, 1], [], []>} : vector<1x128xf32>, vector<128x128xf32>, vector<1x128xf32> -> vector<1x128xf32>
    %27 = arith.addf %26, %14 : vector<1x128xf32>
    %28 = arith.index_cast %c1_i32 : i32 to index
    %c0_29 = arith.constant 0 : index
    %29 = vector.load %arg9[%28, %c0_29] : memref<8x128xf32, #tpu.memory_space<vmem>>, vector<1x128xf32>
    tpu.vector_store %arg9[%28, %c0_29], %27 {strides = array<i32>} : memref<8x128xf32, #tpu.memory_space<vmem>>, vector<1x128xf32>,
    %c0_30 = arith.constant 0 : index
    %30 = arith.index_cast %c1_i32 : i32 to index
    %c0_31 = arith.constant 0 : index
    %31 = vector.load %arg8[%c0_30, %30, %c0_31] : memref<2x8x128xf32, #tpu.memory_space<vmem>>, vector<1x1x128xf32>
    %32 = vector.shape_cast %31 : vector<1x1x128xf32> to vector<1x128xf32>
    %33 = arith.addf %32, %27 : vector<1x128xf32>
    %34 = math.tanh %33 : vector<1x128xf32>
    %c2_i32 = arith.constant 2 : i32
    %cst_32 = arith.constant dense<0.000000e+00> : vector<1x128xf32>
    %35 = tpu.matmul %34, %12, %cst_32 {dimension_numbers = #tpu.dot_dimension_numbers<[1], [0], [0], [1], [0, 0, 1, 1], [], []>} : vector<1x128xf32>, vector<128x128xf32>, vector<1x128xf32> -> vector<1x128xf32>
    %36 = arith.addf %35, %14 : vector<1x128xf32>
    %37 = arith.index_cast %c2_i32 : i32 to index
    %c0_33 = arith.constant 0 : index
    %38 = vector.load %arg9[%37, %c0_33] : memref<8x128xf32, #tpu.memory_space<vmem>>, vector<1x128xf32>
    tpu.vector_store %arg9[%37, %c0_33], %36 {strides = array<i32>} : memref<8x128xf32, #tpu.memory_space<vmem>>, vector<1x128xf32>,
    %c0_34 = arith.constant 0 : index
    %39 = arith.index_cast %c2_i32 : i32 to index
    %c0_35 = arith.constant 0 : index
    %40 = vector.load %arg8[%c0_34, %39, %c0_35] : memref<2x8x128xf32, #tpu.memory_space<vmem>>, vector<1x1x128xf32>
    %41 = vector.shape_cast %40 : vector<1x1x128xf32> to vector<1x128xf32>
    %42 = arith.addf %41, %36 : vector<1x128xf32>
    %43 = math.tanh %42 : vector<1x128xf32>
    %c3_i32 = arith.constant 3 : i32
    %cst_36 = arith.constant dense<0.000000e+00> : vector<1x128xf32>
    %44 = tpu.matmul %43, %12, %cst_36 {dimension_numbers = #tpu.dot_dimension_numbers<[1], [0], [0], [1], [0, 0, 1, 1], [], []>} : vector<1x128xf32>, vector<128x128xf32>, vector<1x128xf32> -> vector<1x128xf32>
    %45 = arith.addf %44, %14 : vector<1x128xf32>
    %46 = arith.index_cast %c3_i32 : i32 to index
    %c0_37 = arith.constant 0 : index
    %47 = vector.load %arg9[%46, %c0_37] : memref<8x128xf32, #tpu.memory_space<vmem>>, vector<1x128xf32>
    tpu.vector_store %arg9[%46, %c0_37], %45 {strides = array<i32>} : memref<8x128xf32, #tpu.memory_space<vmem>>, vector<1x128xf32>,
    %c0_38 = arith.constant 0 : index
    %48 = arith.index_cast %c3_i32 : i32 to index
    %c0_39 = arith.constant 0 : index
    %49 = vector.load %arg8[%c0_38, %48, %c0_39] : memref<2x8x128xf32, #tpu.memory_space<vmem>>, vector<1x1x128xf32>
    %50 = vector.shape_cast %49 : vector<1x1x128xf32> to vector<1x128xf32>
    %51 = arith.addf %50, %45 : vector<1x128xf32>
    %52 = math.tanh %51 : vector<1x128xf32>
    %c4_i32 = arith.constant 4 : i32
    %cst_40 = arith.constant dense<0.000000e+00> : vector<1x128xf32>
    %53 = tpu.matmul %52, %12, %cst_40 {dimension_numbers = #tpu.dot_dimension_numbers<[1], [0], [0], [1], [0, 0, 1, 1], [], []>} : vector<1x128xf32>, vector<128x128xf32>, vector<1x128xf32> -> vector<1x128xf32>
    %54 = arith.addf %53, %14 : vector<1x128xf32>
    %55 = arith.index_cast %c4_i32 : i32 to index
    %c0_41 = arith.constant 0 : index
    %56 = vector.load %arg9[%55, %c0_41] : memref<8x128xf32, #tpu.memory_space<vmem>>, vector<1x128xf32>
    tpu.vector_store %arg9[%55, %c0_41], %54 {strides = array<i32>} : memref<8x128xf32, #tpu.memory_space<vmem>>, vector<1x128xf32>,
    %c0_42 = arith.constant 0 : index
    %57 = arith.index_cast %c4_i32 : i32 to index
    %c0_43 = arith.constant 0 : index
    %58 = vector.load %arg8[%c0_42, %57, %c0_43] : memref<2x8x128xf32, #tpu.memory_space<vmem>>, vector<1x1x128xf32>
    %59 = vector.shape_cast %58 : vector<1x1x128xf32> to vector<1x128xf32>
    %60 = arith.addf %59, %54 : vector<1x128xf32>
    %61 = math.tanh %60 : vector<1x128xf32>
    %c5_i32 = arith.constant 5 : i32
    %cst_44 = arith.constant dense<0.000000e+00> : vector<1x128xf32>
    %62 = tpu.matmul %61, %12, %cst_44 {dimension_numbers = #tpu.dot_dimension_numbers<[1], [0], [0], [1], [0, 0, 1, 1], [], []>} : vector<1x128xf32>, vector<128x128xf32>, vector<1x128xf32> -> vector<1x128xf32>
    %63 = arith.addf %62, %14 : vector<1x128xf32>
    %64 = arith.index_cast %c5_i32 : i32 to index
    %c0_45 = arith.constant 0 : index
    %65 = vector.load %arg9[%64, %c0_45] : memref<8x128xf32, #tpu.memory_space<vmem>>, vector<1x128xf32>
    tpu.vector_store %arg9[%64, %c0_45], %63 {strides = array<i32>} : memref<8x128xf32, #tpu.memory_space<vmem>>, vector<1x128xf32>,
    %c0_46 = arith.constant 0 : index
    %66 = arith.index_cast %c5_i32 : i32 to index
    %c0_47 = arith.constant 0 : index
    %67 = vector.load %arg8[%c0_46, %66, %c0_47] : memref<2x8x128xf32, #tpu.memory_space<vmem>>, vector<1x1x128xf32>
    %68 = vector.shape_cast %67 : vector<1x1x128xf32> to vector<1x128xf32>
    %69 = arith.addf %68, %63 : vector<1x128xf32>
    %70 = math.tanh %69 : vector<1x128xf32>
    %c6_i32 = arith.constant 6 : i32
    %cst_48 = arith.constant dense<0.000000e+00> : vector<1x128xf32>
    %71 = tpu.matmul %70, %12, %cst_48 {dimension_numbers = #tpu.dot_dimension_numbers<[1], [0], [0], [1], [0, 0, 1, 1], [], []>} : vector<1x128xf32>, vector<128x128xf32>, vector<1x128xf32> -> vector<1x128xf32>
    %72 = arith.addf %71, %14 : vector<1x128xf32>
    %73 = arith.index_cast %c6_i32 : i32 to index
    %c0_49 = arith.constant 0 : index
    %74 = vector.load %arg9[%73, %c0_49] : memref<8x128xf32, #tpu.memory_space<vmem>>, vector<1x128xf32>
    tpu.vector_store %arg9[%73, %c0_49], %72 {strides = array<i32>} : memref<8x128xf32, #tpu.memory_space<vmem>>, vector<1x128xf32>,
    %c0_50 = arith.constant 0 : index
    %75 = arith.index_cast %c6_i32 : i32 to index
    %c0_51 = arith.constant 0 : index
    %76 = vector.load %arg8[%c0_50, %75, %c0_51] : memref<2x8x128xf32, #tpu.memory_space<vmem>>, vector<1x1x128xf32>
    %77 = vector.shape_cast %76 : vector<1x1x128xf32> to vector<1x128xf32>
    %78 = arith.addf %77, %72 : vector<1x128xf32>
    %79 = math.tanh %78 : vector<1x128xf32>
    %c7_i32 = arith.constant 7 : i32
    %cst_52 = arith.constant dense<0.000000e+00> : vector<1x128xf32>
    %80 = tpu.matmul %79, %12, %cst_52 {dimension_numbers = #tpu.dot_dimension_numbers<[1], [0], [0], [1], [0, 0, 1, 1], [], []>} : vector<1x128xf32>, vector<128x128xf32>, vector<1x128xf32> -> vector<1x128xf32>
    %81 = arith.addf %80, %14 : vector<1x128xf32>
    %82 = arith.index_cast %c7_i32 : i32 to index
    %c0_53 = arith.constant 0 : index
    %83 = vector.load %arg9[%82, %c0_53] : memref<8x128xf32, #tpu.memory_space<vmem>>, vector<1x128xf32>
    tpu.vector_store %arg9[%82, %c0_53], %81 {strides = array<i32>} : memref<8x128xf32, #tpu.memory_space<vmem>>, vector<1x128xf32>,
    %c0_54 = arith.constant 0 : index
    %84 = arith.index_cast %c7_i32 : i32 to index
    %c0_55 = arith.constant 0 : index
    %85 = vector.load %arg8[%c0_54, %84, %c0_55] : memref<2x8x128xf32, #tpu.memory_space<vmem>>, vector<1x1x128xf32>
    %86 = vector.shape_cast %85 : vector<1x1x128xf32> to vector<1x128xf32>
    %87 = arith.addf %86, %81 : vector<1x128xf32>
    %88 = math.tanh %87 : vector<1x128xf32>
    %c8_i32 = arith.constant 8 : i32
    %c0_56 = arith.constant 0 : index
    %c0_57 = arith.constant 0 : index
    %c0_58 = arith.constant 0 : index
    %89 = vector.load %arg10[%c0_56, %c0_57, %c0_58] : memref<1x1x128xf32, #tpu.memory_space<vmem>>, vector<1x1x128xf32>
    %90 = vector.shape_cast %89 : vector<1x1x128xf32> to vector<1x128xf32>
    %91 = vector.shape_cast %88 : vector<1x128xf32> to vector<1x1x128xf32>
    tpu.vector_store %arg10[%c0_56, %c0_57, %c0_58], %91 {strides = array<i32>} : memref<1x1x128xf32, #tpu.memory_space<vmem>>, vector<1x1x128xf32>,
    %c0_59 = arith.constant 0 : index
    %c0_60 = arith.constant 0 : index
    %c0_61 = arith.constant 0 : index
    %92 = vector.load %arg8[%c0_59, %c0_60, %c0_61] : memref<2x8x128xf32, #tpu.memory_space<vmem>>, vector<2x8x128xf32>
    %c0_62 = arith.constant 0 : index
    %c0_63 = arith.constant 0 : index
    %93 = vector.load %arg9[%c0_62, %c0_63] : memref<8x128xf32, #tpu.memory_space<vmem>>, vector<8x128xf32>
    %94 = vector.shape_cast %93 : vector<8x128xf32> to vector<1x8x128xf32>
    %95 = vector.broadcast %94 : vector<1x8x128xf32> to vector<2x8x128xf32>
    %96 = arith.addf %92, %95 : vector<2x8x128xf32>
    %97 = math.tanh %96 : vector<2x8x128xf32>
    %c0_64 = arith.constant 0 : index
    %c0_65 = arith.constant 0 : index
    %c0_66 = arith.constant 0 : index
    %98 = vector.load %arg5[%c0_64, %c0_65, %c0_66] : memref<2x8x128xf32, #tpu.memory_space<vmem>>, vector<2x8x128xf32>
    tpu.vector_store %arg5[%c0_64, %c0_65, %c0_66], %97 {strides = array<i32>} : memref<2x8x128xf32, #tpu.memory_space<vmem>>, vector<2x8x128xf32>,
    %c0_i32_67 = arith.constant 0 : i32
    %99 = arith.cmpi eq, %arg0, %c0_i32_67 : i32
    %100 = arith.extui %99 : i1 to i32
    %c0_i32_68 = arith.constant 0 : i32
    %101 = arith.cmpi ne, %100, %c0_i32_68 : i32
    scf.if %101 {
      %102 = vector.extract_strided_slice %97 {offsets = [0, 7, 0], sizes = [2, 1, 128], strides = [1, 1, 1]} : vector<2x8x128xf32> to vector<2x1x128xf32>
      %103 = vector.shape_cast %102 : vector<2x1x128xf32> to vector<2x128xf32>
      %c0_69 = arith.constant 0 : index
      %c0_70 = arith.constant 0 : index
      %c0_71 = arith.constant 0 : index
      %104 = vector.load %arg6[%c0_69, %c0_70, %c0_71] : memref<1x2x128xf32, #tpu.memory_space<vmem>>, vector<1x2x128xf32>
      %105 = vector.shape_cast %104 : vector<1x2x128xf32> to vector<2x128xf32>
      %106 = vector.shape_cast %103 : vector<2x128xf32> to vector<1x2x128xf32>
      tpu.vector_store %arg6[%c0_69, %c0_70, %c0_71], %106 {strides = array<i32>} : memref<1x2x128xf32, #tpu.memory_space<vmem>>, vector<1x2x128xf32>,
    } else {
    }
    return
  }
  func.func @transform_0(%arg0: i32) -> (i32, i32, i32) {
    %c0_i32 = arith.constant 0 : i32
    %c0_i32_0 = arith.constant 0 : i32
    %c0_i32_1 = arith.constant 0 : i32
    return %c0_i32, %arg0, %c0_i32_0 : i32, i32, i32
  }
  func.func @transform_1(%arg0: i32) -> (i32, i32) {
    %c0_i32 = arith.constant 0 : i32
    %c0_i32_0 = arith.constant 0 : i32
    %c0_i32_1 = arith.constant 0 : i32
    return %c0_i32, %c0_i32_0 : i32, i32
  }
  func.func @transform_2(%arg0: i32) -> (i32, i32, i32) {
    %c0_i32 = arith.constant 0 : i32
    %c0_i32_0 = arith.constant 0 : i32
    %c0_i32_1 = arith.constant 0 : i32
    %c0_i32_2 = arith.constant 0 : i32
    return %c0_i32, %c0_i32_0, %c0_i32_1 : i32, i32, i32
  }
  func.func @transform_3(%arg0: i32) -> (i32, i32, i32) {
    %c0_i32 = arith.constant 0 : i32
    %c0_i32_0 = arith.constant 0 : i32
    %c0_i32_1 = arith.constant 0 : i32
    %c0_i32_2 = arith.constant 0 : i32
    return %c0_i32, %c0_i32_0, %c0_i32_1 : i32, i32, i32
  }
  func.func @transform_4(%arg0: i32) -> (i32, i32, i32) {
    %c0_i32 = arith.constant 0 : i32
    %c0_i32_0 = arith.constant 0 : i32
    %c0_i32_1 = arith.constant 0 : i32
    return %c0_i32, %arg0, %c0_i32_0 : i32, i32, i32
  }
  func.func @transform_5(%arg0: i32) -> (i32, i32, i32) {
    %c0_i32 = arith.constant 0 : i32
    %c0_i32_0 = arith.constant 0 : i32
    %c0_i32_1 = arith.constant 0 : i32
    %c0_i32_2 = arith.constant 0 : i32
    return %c0_i32, %c0_i32_0, %c0_i32_1 : i32, i32, i32
  }
}

</mosaic_0001>

<llo_original>
// kernel: tpu_custom_call.1
$region0: #{tpu_custom_call.1}
  #allocation0 [shape = 'u32[]', space=smem, size = 0x4, offset = 0x4, fixed_abs, tag = 'smem constant byte address 0x4 - core index']
  #allocation1 [shape = 'u32[144,128]{1,0:T(1,128)}', space=vmem, size = 0x12000, scoped, tag = 'internal scratch']
  #allocation2 [shape = 'f32[2,8,128]{2,1,0:T(8,128)}', space=vmem, size = 0x2000, scoped, tag = 'scratch operand']
  #allocation3 [shape = 'f32[2,8,128]{2,1,0:T(8,128)}', space=vmem, size = 0x2000, scoped, tag = 'scratch operand']
  #allocation4 [shape = 'f32[8,128]{1,0:T(8,128)}', space=vmem, size = 0x1000, scoped, tag = 'scratch operand']
  #allocation5 [shape = 'f32[1,1,128]{2,1,0:T(1,128)}', space=vmem, size = 0x200, scoped, tag = 'scratch operand']
  %s0 = inlined_call_operand.vmem [shape: f32[2,8,4], index: 0, kind: input, shape index: {}]
  %s1 = inlined_call_operand.hbm [shape: f32[128,128], index: 1, kind: input, shape index: {}]
  %s2 = inlined_call_operand.hbm [shape: f32[1,128,128], index: 2, kind: input, shape index: {}]
  %s3 = inlined_call_operand.vmem [shape: f32[1,1,128], index: 3, kind: input, shape index: {}]
  %s4 = inlined_call_operand.hbm [shape: f32[2,8,128], index: 4, kind: output, shape index: {0}]
  %s5 = inlined_call_operand.hbm [shape: f32[1,2,128], index: 5, kind: output, shape index: {1}]
  %6 = xla_tuple %s4, %s5
  %s7 = sld [smem:[#allocation0]]
  $region50: #{tpu_custom_call.1} parent=0
    _
  %s9 = ssub.s32 1, %s7
  %s10 = scalar_select 0, %s9, %s7
  $region1: #{tpu_custom_call.1} parent=0
    #allocation6 [shape = 'u8[65536]{0}', space=vmem, size = 0x10000, scoped, tag = 'input window, operand 1, single buffered']
    #allocation7 [shape = 's32[1]{0}', space=sflag, size = 0x4, scoped, tag = 'scoped memory for tpu_custom_call.1']
    #allocation8 [shape = 's32[1]{0}', space=sflag, size = 0x4, scoped, tag = 'scoped memory for tpu_custom_call.1']
    #allocation9 [shape = 'u8[65536]{0}', space=vmem, size = 0x10000, scoped, tag = 'input window, operand 2, single buffered']
    #allocation10 [shape = 's32[1]{0}', space=sflag, size = 0x4, scoped, tag = 'scoped memory for tpu_custom_call.1']
    #allocation11 [shape = 'u8[8192]{0}', space=vmem, size = 0x2000, scoped, tag = 'output window, operand 0, single buffered']
    #allocation12 [shape = 'u8[1024]{0}', space=vmem, size = 0x400, scoped, tag = 'output window, operand 1, single buffered']
    #allocation13 [shape = 's32[1]{0}', space=sflag, size = 0x4, scoped, tag = 'scoped memory for tpu_custom_call.1']
    %11 = vsyncpa [#allocation7], 0
    %12 = vsyncpa [#allocation10], 0
    %13 = vsyncpa [#allocation8], 0
    %14 = vsyncpa [#allocation13], 0
    // Predicated region
    $region2: #{tpu_custom_call.1} parent=1 // pred_check
      _
    $region3: #{tpu_custom_call.1} parent=1 // pred_check_branch
      %16 = sbr.rel (0) target = $region5
    $region4: #{tpu_custom_call.1} parent=1 // pred_region
      _
    $region5: #{tpu_custom_call.1} parent=1 // pred_fallthru
      _
    // Predicated region
    $region6: #{tpu_custom_call.1} parent=1 // pred_check
      _
    $region7: #{tpu_custom_call.1} parent=1 // pred_check_branch
      %18 = sbr.rel (0) target = $region9
    $region8: #{tpu_custom_call.1} parent=1 // pred_region
      %s20 = ssub.s32 2048, 2048
      %21 = vsyncadd [#allocation7], %s20
      %s22 = sshll.u32 [#allocation6], 4
      %s23 = int_to_ptr.vmem [resolvable:$true] %s22
      %28 = dma.hbm_to_vmem [thread:$0]  %s1, 2048, %s23, [#allocation7], 128, 128, 8
    $region9: #{tpu_custom_call.1} parent=1 // pred_fallthru
      _
    // Predicated region
    $region10: #{tpu_custom_call.1} parent=1 // pred_check
      _
    $region11: #{tpu_custom_call.1} parent=1 // pred_check_branch
      %30 = sbr.rel (0) target = $region13
    $region12: #{tpu_custom_call.1} parent=1 // pred_region
      %s32 = ssub.s32 2048, 2048
      %33 = vsyncadd [#allocation10], %s32
      %s34 = sshll.u32 [#allocation9], 4
      %s35 = int_to_ptr.vmem [resolvable:$true] %s34
      %40 = dma.hbm_to_vmem [thread:$0]  %s2, 2048, %s35, [#allocation10], 128, 128, 8
    $region13: #{tpu_custom_call.1} parent=1 // pred_fallthru
      _
    // Predicated region
    $region14: #{tpu_custom_call.1} parent=1 // pred_check
      _
    $region15: #{tpu_custom_call.1} parent=1 // pred_check_branch
      %42 = sbr.rel (0) target = $region17
    $region16: #{tpu_custom_call.1} parent=1 // pred_region
      _
    $region17: #{tpu_custom_call.1} parent=1 // pred_fallthru
      _
    // Predicated region
    $region18: #{tpu_custom_call.1} parent=1 // pred_check
      _
    $region19: #{tpu_custom_call.1} parent=1 // pred_check_branch
      %44 = sbr.rel (0) target = $region21
    $region20: #{tpu_custom_call.1} parent=1 // pred_region
      %45 = dma.done [#allocation7], 2048
    $region21: #{tpu_custom_call.1} parent=1 // pred_fallthru
      _
    // Predicated region
    $region22: #{tpu_custom_call.1} parent=1 // pred_check
      _
    $region23: #{tpu_custom_call.1} parent=1 // pred_check_branch
      %47 = sbr.rel (0) target = $region25
    $region24: #{tpu_custom_call.1} parent=1 // pred_region
      %48 = dma.done [#allocation10], 2048
    $region25: #{tpu_custom_call.1} parent=1 // pred_fallthru
      _
    %p49 = scmp.eq.s32.totalorder 0, 0
    // Predicated region
    $region26: #{tpu_custom_call.1} parent=1 // pred_check
      %p50 = pneg %p49
    $region27: #{tpu_custom_call.1} parent=1 // pred_check_branch
      %52 = sbr.rel (%p50) target = $region29
    $region28: #{tpu_custom_call.1} parent=1 // pred_region
      %53 = vst [vmem:[#allocation5] sm:$0x1] 0.0
      %54 = vst [vmem:[#allocation2] sm:$0xff] 0.0
      %55 = vst [vmem:[#allocation2 + $0x8] sm:$0xff] 0.0
    $region29: #{tpu_custom_call.1} parent=1 // pred_fallthru
      _
    %v56 = vld [vmem:[%s0] sm:$0xff]
    %v57 = vld [vmem:[%s0 + $0x8] sm:$0xff]
    %vm58 = vcmask 31744
    %59 = vst.msk [vmem:[#allocation2] sm:$0xff] %vm58, %v56
    %60 = vst.msk [vmem:[#allocation2 + $0x8] sm:$0xff] %vm58, %v57
    %v61 = vld [vmem:[#allocation2] sm:$0xff]
    %v62 = vld [vmem:[#allocation2 + $0x8] sm:$0xff]
    %v63 = vld [vmem:[#allocation6] sm:$0xff]
    %v64 = vld [vmem:[#allocation6 + $0x8] sm:$0xff]
    %v65 = vld [vmem:[#allocation6 + $0x10] sm:$0xff]
    %v66 = vld [vmem:[#allocation6 + $0x18] sm:$0xff]
    %v67 = vld [vmem:[#allocation6 + $0x20] sm:$0xff]
    %v68 = vld [vmem:[#allocation6 + $0x28] sm:$0xff]
    %v69 = vld [vmem:[#allocation6 + $0x30] sm:$0xff]
    %v70 = vld [vmem:[#allocation6 + $0x38] sm:$0xff]
    %v71 = vld [vmem:[#allocation6 + $0x40] sm:$0xff]
    %v72 = vld [vmem:[#allocation6 + $0x48] sm:$0xff]
    %v73 = vld [vmem:[#allocation6 + $0x50] sm:$0xff]
    %v74 = vld [vmem:[#allocation6 + $0x58] sm:$0xff]
    %v75 = vld [vmem:[#allocation6 + $0x60] sm:$0xff]
    %v76 = vld [vmem:[#allocation6 + $0x68] sm:$0xff]
    %v77 = vld [vmem:[#allocation6 + $0x70] sm:$0xff]
    %v78 = vld [vmem:[#allocation6 + $0x78] sm:$0xff]
    %79 = vmatprep.subr.mxu0 0.0
    %80 = vmatpush1.msra.mxu0 %v63
    %81 = vmatprep.subr.mxu0 0.0
    %82 = vmatpush1.msra.mxu0 %v64
    %83 = vmatprep.subr.mxu0 0.0
    %84 = vmatpush1.msra.mxu0 %v65
    %85 = vmatprep.subr.mxu0 0.0
    %86 = vmatpush1.msra.mxu0 %v66
    %87 = vmatprep.subr.mxu0 0.0
    %88 = vmatpush1.msra.mxu0 %v67
    %89 = vmatprep.subr.mxu0 0.0
    %90 = vmatpush1.msra.mxu0 %v68
    %91 = vmatprep.subr.mxu0 0.0
    %92 = vmatpush1.msra.mxu0 %v69
    %93 = vmatprep.subr.mxu0 0.0
    %94 = vmatpush1.msra.mxu0 %v70
    %95 = vmatprep.subr.mxu0 0.0
    %96 = vmatpush1.msra.mxu0 %v71
    %97 = vmatprep.subr.mxu0 0.0
    %98 = vmatpush1.msra.mxu0 %v72
    %99 = vmatprep.subr.mxu0 0.0
    %100 = vmatpush1.msra.mxu0 %v73
    %101 = vmatprep.subr.mxu0 0.0
    %102 = vmatpush1.msra.mxu0 %v74
    %103 = vmatprep.subr.mxu0 0.0
    %104 = vmatpush1.msra.mxu0 %v75
    %105 = vmatprep.subr.mxu0 0.0
    %106 = vmatpush1.msra.mxu0 %v76
    %107 = vmatprep.subr.mxu0 0.0
    %108 = vmatpush1.msra.mxu0 %v77
    %109 = vmatprep.subr.mxu0 0.0
    %110 = vmatpush1.msra.mxu0 %v78
    %111 = vmatprep.subr.mxu0 0.0
    %112 = vmatpush1.msra.mxu0 0.0
    %113 = vmatprep.subr.mxu0 0.0
    %114 = vmatpush1.msra.mxu0 0.0
    %115 = vmatprep.subr.mxu0 0.0
    %116 = vmatpush1.msra.mxu0 0.0
    %117 = vmatprep.subr.mxu0 0.0
    %118 = vmatpush1.msra.mxu0 0.0
    %119 = vmatprep.subr.mxu0 0.0
    %120 = vmatpush1.msra.mxu0 0.0
    %121 = vmatprep.subr.mxu0 0.0
    %122 = vmatpush1.msra.mxu0 0.0
    %123 = vmatprep.subr.mxu0 0.0
    %124 = vmatpush1.msra.mxu0 0.0
    %125 = vmatprep.subr.mxu0 0.0
    %126 = vmatpush1.msra.mxu0 0.0
    %127 = vmatprep.subr.mxu0 0.0
    %128 = vmatpush1.msra.mxu0 0.0
    %129 = vmatprep.subr.mxu0 0.0
    %130 = vmatpush1.msra.mxu0 0.0
    %131 = vmatprep.subr.mxu0 0.0
    %132 = vmatpush1.msra.mxu0 0.0
    %133 = vmatprep.subr.mxu0 0.0
    %134 = vmatpush1.msra.mxu0 0.0
    %135 = vmatprep.subr.mxu0 0.0
    %136 = vmatpush1.msra.mxu0 0.0
    %137 = vmatprep.subr.mxu0 0.0
    %138 = vmatpush1.msra.mxu0 0.0
    %139 = vmatprep.subr.mxu0 0.0
    %140 = vmatpush1.msra.mxu0 0.0
    %141 = vmatprep.subr.mxu0 0.0
    %142 = vmatpush1.msra.mxu0 0.0
    %143 = vmatprep.mubr.f32.mxu0 0.0
    %144 = vmatmul.mubr.f32.gmra.mrb[0].mxu0 %v61
    %v145 = vpop.f32.mrb[0].mxu0
    %v146 = vadd.f32 0.0, %v145
    %v147 = vpop.f32.mrb[0].mxu0
    %148 = vmatprep.mubr.f32.mxu0 0.0
    %149 = vmatmul.mubr.f32.gmra.mrb[0].mxu0 %v62
    %v150 = vpop.f32.mrb[0].mxu0
    %v151 = vadd.f32 0.0, %v150
    %v152 = vpop.f32.mrb[0].mxu0
    %153 = vdwg.mxu0
    %154 = vst [vmem:[#allocation3] sm:$0xff] %v146
    %155 = vst [vmem:[#allocation3 + $0x8] sm:$0xff] %v151
    %v156 = vld [vmem:[#allocation9] sm:$0xff]
    %v157 = vld [vmem:[#allocation9 + $0x8] sm:$0xff]
    %v158 = vld [vmem:[#allocation9 + $0x10] sm:$0xff]
    %v159 = vld [vmem:[#allocation9 + $0x18] sm:$0xff]
    %v160 = vld [vmem:[#allocation9 + $0x20] sm:$0xff]
    %v161 = vld [vmem:[#allocation9 + $0x28] sm:$0xff]
    %v162 = vld [vmem:[#allocation9 + $0x30] sm:$0xff]
    %v163 = vld [vmem:[#allocation9 + $0x38] sm:$0xff]
    %v164 = vld [vmem:[#allocation9 + $0x40] sm:$0xff]
    %v165 = vld [vmem:[#allocation9 + $0x48] sm:$0xff]
    %v166 = vld [vmem:[#allocation9 + $0x50] sm:$0xff]
    %v167 = vld [vmem:[#allocation9 + $0x58] sm:$0xff]
    %v168 = vld [vmem:[#allocation9 + $0x60] sm:$0xff]
    %v169 = vld [vmem:[#allocation9 + $0x68] sm:$0xff]
    %v170 = vld [vmem:[#allocation9 + $0x70] sm:$0xff]
    %v171 = vld [vmem:[#allocation9 + $0x78] sm:$0xff]
    %v172 = vld [vmem:[%s3] sm:$0x1]
    %v173 = vld [vmem:[#allocation5] sm:$0x1]
    %174 = vmatprep.subr.mxu0 0.0
    %175 = vmatpush1.msra.mxu0 %v156
    %176 = vmatprep.subr.mxu0 0.0
    %177 = vmatpush1.msra.mxu0 %v157
    %178 = vmatprep.subr.mxu0 0.0
    %179 = vmatpush1.msra.mxu0 %v158
    %180 = vmatprep.subr.mxu0 0.0
    %181 = vmatpush1.msra.mxu0 %v159
    %182 = vmatprep.subr.mxu0 0.0
    %183 = vmatpush1.msra.mxu0 %v160
    %184 = vmatprep.subr.mxu0 0.0
    %185 = vmatpush1.msra.mxu0 %v161
    %186 = vmatprep.subr.mxu0 0.0
    %187 = vmatpush1.msra.mxu0 %v162
    %188 = vmatprep.subr.mxu0 0.0
    %189 = vmatpush1.msra.mxu0 %v163
    %190 = vmatprep.subr.mxu0 0.0
    %191 = vmatpush1.msra.mxu0 %v164
    %192 = vmatprep.subr.mxu0 0.0
    %193 = vmatpush1.msra.mxu0 %v165
    %194 = vmatprep.subr.mxu0 0.0
    %195 = vmatpush1.msra.mxu0 %v166
    %196 = vmatprep.subr.mxu0 0.0
    %197 = vmatpush1.msra.mxu0 %v167
    %198 = vmatprep.subr.mxu0 0.0
    %199 = vmatpush1.msra.mxu0 %v168
    %200 = vmatprep.subr.mxu0 0.0
    %201 = vmatpush1.msra.mxu0 %v169
    %202 = vmatprep.subr.mxu0 0.0
    %203 = vmatpush1.msra.mxu0 %v170
    %204 = vmatprep.subr.mxu0 0.0
    %205 = vmatpush1.msra.mxu0 %v171
    %206 = vmatprep.subr.mxu0 0.0
    %207 = vmatpush1.msra.mxu0 0.0
    %208 = vmatprep.subr.mxu0 0.0
    %209 = vmatpush1.msra.mxu0 0.0
    %210 = vmatprep.subr.mxu0 0.0
    %211 = vmatpush1.msra.mxu0 0.0
    %212 = vmatprep.subr.mxu0 0.0
    %213 = vmatpush1.msra.mxu0 0.0
    %214 = vmatprep.subr.mxu0 0.0
    %215 = vmatpush1.msra.mxu0 0.0
    %216 = vmatprep.subr.mxu0 0.0
    %217 = vmatpush1.msra.mxu0 0.0
    %218 = vmatprep.subr.mxu0 0.0
    %219 = vmatpush1.msra.mxu0 0.0
    %220 = vmatprep.subr.mxu0 0.0
    %221 = vmatpush1.msra.mxu0 0.0
    %222 = vmatprep.subr.mxu0 0.0
    %223 = vmatpush1.msra.mxu0 0.0
    %224 = vmatprep.subr.mxu0 0.0
    %225 = vmatpush1.msra.mxu0 0.0
    %226 = vmatprep.subr.mxu0 0.0
    %227 = vmatpush1.msra.mxu0 0.0
    %228 = vmatprep.subr.mxu0 0.0
    %229 = vmatpush1.msra.mxu0 0.0
    %230 = vmatprep.subr.mxu0 0.0
    %231 = vmatpush1.msra.mxu0 0.0
    %232 = vmatprep.subr.mxu0 0.0
    %233 = vmatpush1.msra.mxu0 0.0
    %234 = vmatprep.subr.mxu0 0.0
    %235 = vmatpush1.msra.mxu0 0.0
    %236 = vmatprep.subr.mxu0 0.0
    %237 = vmatpush1.msra.mxu0 0.0
    %238 = vmatprep.mubr.f32.mxu0 0.0
    %239 = vmatmul.mubr.f32.gmra.mrb[0].mxu0 %v173
    %v240 = vpop.f32.mrb[0].mxu0
    %v241 = vadd.f32 %v172, %v240
    %v242 = vpop.f32.mrb[0].mxu0
    %243 = vdwg.mxu0
    %244 = vst [vmem:[#allocation4] sm:$0x1] %v241
    %v245 = vld [vmem:[#allocation3] sm:$0x1]
    %v246 = vadd.f32 %v245, %v241
    %v247 = vtanh.pop %v246
    %248 = vmatprep.subr.mxu0 0.0
    %249 = vmatpush1.msra.mxu0 %v156
    %250 = vmatprep.subr.mxu0 0.0
    %251 = vmatpush1.msra.mxu0 %v157
    %252 = vmatprep.subr.mxu0 0.0
    %253 = vmatpush1.msra.mxu0 %v158
    %254 = vmatprep.subr.mxu0 0.0
    %255 = vmatpush1.msra.mxu0 %v159
    %256 = vmatprep.subr.mxu0 0.0
    %257 = vmatpush1.msra.mxu0 %v160
    %258 = vmatprep.subr.mxu0 0.0
    %259 = vmatpush1.msra.mxu0 %v161
    %260 = vmatprep.subr.mxu0 0.0
    %261 = vmatpush1.msra.mxu0 %v162
    %262 = vmatprep.subr.mxu0 0.0
    %263 = vmatpush1.msra.mxu0 %v163
    %264 = vmatprep.subr.mxu0 0.0
    %265 = vmatpush1.msra.mxu0 %v164
    %266 = vmatprep.subr.mxu0 0.0
    %267 = vmatpush1.msra.mxu0 %v165
    %268 = vmatprep.subr.mxu0 0.0
    %269 = vmatpush1.msra.mxu0 %v166
    %270 = vmatprep.subr.mxu0 0.0
    %271 = vmatpush1.msra.mxu0 %v167
    %272 = vmatprep.subr.mxu0 0.0
    %273 = vmatpush1.msra.mxu0 %v168
    %274 = vmatprep.subr.mxu0 0.0
    %275 = vmatpush1.msra.mxu0 %v169
    %276 = vmatprep.subr.mxu0 0.0
    %277 = vmatpush1.msra.mxu0 %v170
    %278 = vmatprep.subr.mxu0 0.0
    %279 = vmatpush1.msra.mxu0 %v171
    %280 = vmatprep.subr.mxu0 0.0
    %281 = vmatpush1.msra.mxu0 0.0
    %282 = vmatprep.subr.mxu0 0.0
    %283 = vmatpush1.msra.mxu0 0.0
    %284 = vmatprep.subr.mxu0 0.0
    %285 = vmatpush1.msra.mxu0 0.0
    %286 = vmatprep.subr.mxu0 0.0
    %287 = vmatpush1.msra.mxu0 0.0
    %288 = vmatprep.subr.mxu0 0.0
    %289 = vmatpush1.msra.mxu0 0.0
    %290 = vmatprep.subr.mxu0 0.0
    %291 = vmatpush1.msra.mxu0 0.0
    %292 = vmatprep.subr.mxu0 0.0
    %293 = vmatpush1.msra.mxu0 0.0
    %294 = vmatprep.subr.mxu0 0.0
    %295 = vmatpush1.msra.mxu0 0.0
    %296 = vmatprep.subr.mxu0 0.0
    %297 = vmatpush1.msra.mxu0 0.0
    %298 = vmatprep.subr.mxu0 0.0
    %299 = vmatpush1.msra.mxu0 0.0
    %300 = vmatprep.subr.mxu0 0.0
    %301 = vmatpush1.msra.mxu0 0.0
    %302 = vmatprep.subr.mxu0 0.0
    %303 = vmatpush1.msra.mxu0 0.0
    %304 = vmatprep.subr.mxu0 0.0
    %305 = vmatpush1.msra.mxu0 0.0
    %306 = vmatprep.subr.mxu0 0.0
    %307 = vmatpush1.msra.mxu0 0.0
    %308 = vmatprep.subr.mxu0 0.0
    %309 = vmatpush1.msra.mxu0 0.0
    %310 = vmatprep.subr.mxu0 0.0
    %311 = vmatpush1.msra.mxu0 0.0
    %312 = vmatprep.mubr.f32.mxu0 0.0
    %313 = vmatmul.mubr.f32.gmra.mrb[0].mxu0 %v247
    %v314 = vpop.f32.mrb[0].mxu0
    %v315 = vadd.f32 %v172, %v314
    %v316 = vpop.f32.mrb[0].mxu0
    %317 = vdwg.mxu0
    %318 = vst [vmem:[#allocation4 + $0x1] sm:$0x1] %v315
    %v319 = vld [vmem:[#allocation3 + $0x1] sm:$0x1]
    %v320 = vadd.f32 %v319, %v315
    %v321 = vtanh.pop %v320
    %322 = vmatprep.subr.mxu0 0.0
    %323 = vmatpush1.msra.mxu0 %v156
    %324 = vmatprep.subr.mxu0 0.0
    %325 = vmatpush1.msra.mxu0 %v157
    %326 = vmatprep.subr.mxu0 0.0
    %327 = vmatpush1.msra.mxu0 %v158
    %328 = vmatprep.subr.mxu0 0.0
    %329 = vmatpush1.msra.mxu0 %v159
    %330 = vmatprep.subr.mxu0 0.0
    %331 = vmatpush1.msra.mxu0 %v160
    %332 = vmatprep.subr.mxu0 0.0
    %333 = vmatpush1.msra.mxu0 %v161
    %334 = vmatprep.subr.mxu0 0.0
    %335 = vmatpush1.msra.mxu0 %v162
    %336 = vmatprep.subr.mxu0 0.0
    %337 = vmatpush1.msra.mxu0 %v163
    %338 = vmatprep.subr.mxu0 0.0
    %339 = vmatpush1.msra.mxu0 %v164
    %340 = vmatprep.subr.mxu0 0.0
    %341 = vmatpush1.msra.mxu0 %v165
    %342 = vmatprep.subr.mxu0 0.0
    %343 = vmatpush1.msra.mxu0 %v166
    %344 = vmatprep.subr.mxu0 0.0
    %345 = vmatpush1.msra.mxu0 %v167
    %346 = vmatprep.subr.mxu0 0.0
    %347 = vmatpush1.msra.mxu0 %v168
    %348 = vmatprep.subr.mxu0 0.0
    %349 = vmatpush1.msra.mxu0 %v169
    %350 = vmatprep.subr.mxu0 0.0
    %351 = vmatpush1.msra.mxu0 %v170
    %352 = vmatprep.subr.mxu0 0.0
    %353 = vmatpush1.msra.mxu0 %v171
    %354 = vmatprep.subr.mxu0 0.0
    %355 = vmatpush1.msra.mxu0 0.0
    %356 = vmatprep.subr.mxu0 0.0
    %357 = vmatpush1.msra.mxu0 0.0
    %358 = vmatprep.subr.mxu0 0.0
    %359 = vmatpush1.msra.mxu0 0.0
    %360 = vmatprep.subr.mxu0 0.0
    %361 = vmatpush1.msra.mxu0 0.0
    %362 = vmatprep.subr.mxu0 0.0
    %363 = vmatpush1.msra.mxu0 0.0
    %364 = vmatprep.subr.mxu0 0.0
    %365 = vmatpush1.msra.mxu0 0.0
    %366 = vmatprep.subr.mxu0 0.0
    %367 = vmatpush1.msra.mxu0 0.0
    %368 = vmatprep.subr.mxu0 0.0
    %369 = vmatpush1.msra.mxu0 0.0
    %370 = vmatprep.subr.mxu0 0.0
    %371 = vmatpush1.msra.mxu0 0.0
    %372 = vmatprep.subr.mxu0 0.0
    %373 = vmatpush1.msra.mxu0 0.0
    %374 = vmatprep.subr.mxu0 0.0
    %375 = vmatpush1.msra.mxu0 0.0
    %376 = vmatprep.subr.mxu0 0.0
    %377 = vmatpush1.msra.mxu0 0.0
    %378 = vmatprep.subr.mxu0 0.0
    %379 = vmatpush1.msra.mxu0 0.0
    %380 = vmatprep.subr.mxu0 0.0
    %381 = vmatpush1.msra.mxu0 0.0
    %382 = vmatprep.subr.mxu0 0.0
    %383 = vmatpush1.msra.mxu0 0.0
    %384 = vmatprep.subr.mxu0 0.0
    %385 = vmatpush1.msra.mxu0 0.0
    %386 = vmatprep.mubr.f32.mxu0 0.0
    %387 = vmatmul.mubr.f32.gmra.mrb[0].mxu0 %v321
    %v388 = vpop.f32.mrb[0].mxu0
    %v389 = vadd.f32 %v172, %v388
    %v390 = vpop.f32.mrb[0].mxu0
    %391 = vdwg.mxu0
    %392 = vst [vmem:[#allocation4 + $0x2] sm:$0x1] %v389
    %v393 = vld [vmem:[#allocation3 + $0x2] sm:$0x1]
    %v394 = vadd.f32 %v393, %v389
    %v395 = vtanh.pop %v394
    %396 = vmatprep.subr.mxu0 0.0
    %397 = vmatpush1.msra.mxu0 %v156
    %398 = vmatprep.subr.mxu0 0.0
    %399 = vmatpush1.msra.mxu0 %v157
    %400 = vmatprep.subr.mxu0 0.0
    %401 = vmatpush1.msra.mxu0 %v158
    %402 = vmatprep.subr.mxu0 0.0
    %403 = vmatpush1.msra.mxu0 %v159
    %404 = vmatprep.subr.mxu0 0.0
    %405 = vmatpush1.msra.mxu0 %v160
    %406 = vmatprep.subr.mxu0 0.0
    %407 = vmatpush1.msra.mxu0 %v161
    %408 = vmatprep.subr.mxu0 0.0
    %409 = vmatpush1.msra.mxu0 %v162
    %410 = vmatprep.subr.mxu0 0.0
    %411 = vmatpush1.msra.mxu0 %v163
    %412 = vmatprep.subr.mxu0 0.0
    %413 = vmatpush1.msra.mxu0 %v164
    %414 = vmatprep.subr.mxu0 0.0
    %415 = vmatpush1.msra.mxu0 %v165
    %416 = vmatprep.subr.mxu0 0.0
    %417 = vmatpush1.msra.mxu0 %v166
    %418 = vmatprep.subr.mxu0 0.0
    %419 = vmatpush1.msra.mxu0 %v167
    %420 = vmatprep.subr.mxu0 0.0
    %421 = vmatpush1.msra.mxu0 %v168
    %422 = vmatprep.subr.mxu0 0.0
    %423 = vmatpush1.msra.mxu0 %v169
    %424 = vmatprep.subr.mxu0 0.0
    %425 = vmatpush1.msra.mxu0 %v170
    %426 = vmatprep.subr.mxu0 0.0
    %427 = vmatpush1.msra.mxu0 %v171
    %428 = vmatprep.subr.mxu0 0.0
    %429 = vmatpush1.msra.mxu0 0.0
    %430 = vmatprep.subr.mxu0 0.0
    %431 = vmatpush1.msra.mxu0 0.0
    %432 = vmatprep.subr.mxu0 0.0
    %433 = vmatpush1.msra.mxu0 0.0
    %434 = vmatprep.subr.mxu0 0.0
    %435 = vmatpush1.msra.mxu0 0.0
    %436 = vmatprep.subr.mxu0 0.0
    %437 = vmatpush1.msra.mxu0 0.0
    %438 = vmatprep.subr.mxu0 0.0
    %439 = vmatpush1.msra.mxu0 0.0
    %440 = vmatprep.subr.mxu0 0.0
    %441 = vmatpush1.msra.mxu0 0.0
    %442 = vmatprep.subr.mxu0 0.0
    %443 = vmatpush1.msra.mxu0 0.0
    %444 = vmatprep.subr.mxu0 0.0
    %445 = vmatpush1.msra.mxu0 0.0
    %446 = vmatprep.subr.mxu0 0.0
    %447 = vmatpush1.msra.mxu0 0.0
    %448 = vmatprep.subr.mxu0 0.0
    %449 = vmatpush1.msra.mxu0 0.0
    %450 = vmatprep.subr.mxu0 0.0
    %451 = vmatpush1.msra.mxu0 0.0
    %452 = vmatprep.subr.mxu0 0.0
    %453 = vmatpush1.msra.mxu0 0.0
    %454 = vmatprep.subr.mxu0 0.0
    %455 = vmatpush1.msra.mxu0 0.0
    %456 = vmatprep.subr.mxu0 0.0
    %457 = vmatpush1.msra.mxu0 0.0
    %458 = vmatprep.subr.mxu0 0.0
    %459 = vmatpush1.msra.mxu0 0.0
    %460 = vmatprep.mubr.f32.mxu0 0.0
    %461 = vmatmul.mubr.f32.gmra.mrb[0].mxu0 %v395
    %v462 = vpop.f32.mrb[0].mxu0
    %v463 = vadd.f32 %v172, %v462
    %v464 = vpop.f32.mrb[0].mxu0
    %465 = vdwg.mxu0
    %466 = vst [vmem:[#allocation4 + $0x3] sm:$0x1] %v463
    %v467 = vld [vmem:[#allocation3 + $0x3] sm:$0x1]
    %v468 = vadd.f32 %v467, %v463
    %v469 = vtanh.pop %v468
    %470 = vmatprep.subr.mxu0 0.0
    %471 = vmatpush1.msra.mxu0 %v156
    %472 = vmatprep.subr.mxu0 0.0
    %473 = vmatpush1.msra.mxu0 %v157
    %474 = vmatprep.subr.mxu0 0.0
    %475 = vmatpush1.msra.mxu0 %v158
    %476 = vmatprep.subr.mxu0 0.0
    %477 = vmatpush1.msra.mxu0 %v159
    %478 = vmatprep.subr.mxu0 0.0
    %479 = vmatpush1.msra.mxu0 %v160
    %480 = vmatprep.subr.mxu0 0.0
    %481 = vmatpush1.msra.mxu0 %v161
    %482 = vmatprep.subr.mxu0 0.0
    %483 = vmatpush1.msra.mxu0 %v162
    %484 = vmatprep.subr.mxu0 0.0
    %485 = vmatpush1.msra.mxu0 %v163
    %486 = vmatprep.subr.mxu0 0.0
    %487 = vmatpush1.msra.mxu0 %v164
    %488 = vmatprep.subr.mxu0 0.0
    %489 = vmatpush1.msra.mxu0 %v165
    %490 = vmatprep.subr.mxu0 0.0
    %491 = vmatpush1.msra.mxu0 %v166
    %492 = vmatprep.subr.mxu0 0.0
    %493 = vmatpush1.msra.mxu0 %v167
    %494 = vmatprep.subr.mxu0 0.0
    %495 = vmatpush1.msra.mxu0 %v168
    %496 = vmatprep.subr.mxu0 0.0
    %497 = vmatpush1.msra.mxu0 %v169
    %498 = vmatprep.subr.mxu0 0.0
    %499 = vmatpush1.msra.mxu0 %v170
    %500 = vmatprep.subr.mxu0 0.0
    %501 = vmatpush1.msra.mxu0 %v171
    %502 = vmatprep.subr.mxu0 0.0
    %503 = vmatpush1.msra.mxu0 0.0
    %504 = vmatprep.subr.mxu0 0.0
    %505 = vmatpush1.msra.mxu0 0.0
    %506 = vmatprep.subr.mxu0 0.0
    %507 = vmatpush1.msra.mxu0 0.0
    %508 = vmatprep.subr.mxu0 0.0
    %509 = vmatpush1.msra.mxu0 0.0
    %510 = vmatprep.subr.mxu0 0.0
    %511 = vmatpush1.msra.mxu0 0.0
    %512 = vmatprep.subr.mxu0 0.0
    %513 = vmatpush1.msra.mxu0 0.0
    %514 = vmatprep.subr.mxu0 0.0
    %515 = vmatpush1.msra.mxu0 0.0
    %516 = vmatprep.subr.mxu0 0.0
    %517 = vmatpush1.msra.mxu0 0.0
    %518 = vmatprep.subr.mxu0 0.0
    %519 = vmatpush1.msra.mxu0 0.0
    %520 = vmatprep.subr.mxu0 0.0
    %521 = vmatpush1.msra.mxu0 0.0
    %522 = vmatprep.subr.mxu0 0.0
    %523 = vmatpush1.msra.mxu0 0.0
    %524 = vmatprep.subr.mxu0 0.0
    %525 = vmatpush1.msra.mxu0 0.0
    %526 = vmatprep.subr.mxu0 0.0
    %527 = vmatpush1.msra.mxu0 0.0
    %528 = vmatprep.subr.mxu0 0.0
    %529 = vmatpush1.msra.mxu0 0.0
    %530 = vmatprep.subr.mxu0 0.0
    %531 = vmatpush1.msra.mxu0 0.0
    %532 = vmatprep.subr.mxu0 0.0
    %533 = vmatpush1.msra.mxu0 0.0
    %534 = vmatprep.mubr.f32.mxu0 0.0
    %535 = vmatmul.mubr.f32.gmra.mrb[0].mxu0 %v469
    %v536 = vpop.f32.mrb[0].mxu0
    %v537 = vadd.f32 %v172, %v536
    %v538 = vpop.f32.mrb[0].mxu0
    %539 = vdwg.mxu0
    %540 = vst [vmem:[#allocation4 + $0x4] sm:$0x1] %v537
    %v541 = vld [vmem:[#allocation3 + $0x4] sm:$0x1]
    %v542 = vadd.f32 %v541, %v537
    %v543 = vtanh.pop %v542
    %544 = vmatprep.subr.mxu0 0.0
    %545 = vmatpush1.msra.mxu0 %v156
    %546 = vmatprep.subr.mxu0 0.0
    %547 = vmatpush1.msra.mxu0 %v157
    %548 = vmatprep.subr.mxu0 0.0
    %549 = vmatpush1.msra.mxu0 %v158
    %550 = vmatprep.subr.mxu0 0.0
    %551 = vmatpush1.msra.mxu0 %v159
    %552 = vmatprep.subr.mxu0 0.0
    %553 = vmatpush1.msra.mxu0 %v160
    %554 = vmatprep.subr.mxu0 0.0
    %555 = vmatpush1.msra.mxu0 %v161
    %556 = vmatprep.subr.mxu0 0.0
    %557 = vmatpush1.msra.mxu0 %v162
    %558 = vmatprep.subr.mxu0 0.0
    %559 = vmatpush1.msra.mxu0 %v163
    %560 = vmatprep.subr.mxu0 0.0
    %561 = vmatpush1.msra.mxu0 %v164
    %562 = vmatprep.subr.mxu0 0.0
    %563 = vmatpush1.msra.mxu0 %v165
    %564 = vmatprep.subr.mxu0 0.0
    %565 = vmatpush1.msra.mxu0 %v166
    %566 = vmatprep.subr.mxu0 0.0
    %567 = vmatpush1.msra.mxu0 %v167
    %568 = vmatprep.subr.mxu0 0.0
    %569 = vmatpush1.msra.mxu0 %v168
    %570 = vmatprep.subr.mxu0 0.0
    %571 = vmatpush1.msra.mxu0 %v169
    %572 = vmatprep.subr.mxu0 0.0
    %573 = vmatpush1.msra.mxu0 %v170
    %574 = vmatprep.subr.mxu0 0.0
    %575 = vmatpush1.msra.mxu0 %v171
    %576 = vmatprep.subr.mxu0 0.0
    %577 = vmatpush1.msra.mxu0 0.0
    %578 = vmatprep.subr.mxu0 0.0
    %579 = vmatpush1.msra.mxu0 0.0
    %580 = vmatprep.subr.mxu0 0.0
    %581 = vmatpush1.msra.mxu0 0.0
    %582 = vmatprep.subr.mxu0 0.0
    %583 = vmatpush1.msra.mxu0 0.0
    %584 = vmatprep.subr.mxu0 0.0
    %585 = vmatpush1.msra.mxu0 0.0
    %586 = vmatprep.subr.mxu0 0.0
    %587 = vmatpush1.msra.mxu0 0.0
    %588 = vmatprep.subr.mxu0 0.0
    %589 = vmatpush1.msra.mxu0 0.0
    %590 = vmatprep.subr.mxu0 0.0
    %591 = vmatpush1.msra.mxu0 0.0
    %592 = vmatprep.subr.mxu0 0.0
    %593 = vmatpush1.msra.mxu0 0.0
    %594 = vmatprep.subr.mxu0 0.0
    %595 = vmatpush1.msra.mxu0 0.0
    %596 = vmatprep.subr.mxu0 0.0
    %597 = vmatpush1.msra.mxu0 0.0
    %598 = vmatprep.subr.mxu0 0.0
    %599 = vmatpush1.msra.mxu0 0.0
    %600 = vmatprep.subr.mxu0 0.0
    %601 = vmatpush1.msra.mxu0 0.0
    %602 = vmatprep.subr.mxu0 0.0
    %603 = vmatpush1.msra.mxu0 0.0
    %604 = vmatprep.subr.mxu0 0.0
    %605 = vmatpush1.msra.mxu0 0.0
    %606 = vmatprep.subr.mxu0 0.0
    %607 = vmatpush1.msra.mxu0 0.0
    %608 = vmatprep.mubr.f32.mxu0 0.0
    %609 = vmatmul.mubr.f32.gmra.mrb[0].mxu0 %v543
    %v610 = vpop.f32.mrb[0].mxu0
    %v611 = vadd.f32 %v172, %v610
    %v612 = vpop.f32.mrb[0].mxu0
    %613 = vdwg.mxu0
    %614 = vst [vmem:[#allocation4 + $0x5] sm:$0x1] %v611
    %v615 = vld [vmem:[#allocation3 + $0x5] sm:$0x1]
    %v616 = vadd.f32 %v615, %v611
    %v617 = vtanh.pop %v616
    %618 = vmatprep.subr.mxu0 0.0
    %619 = vmatpush1.msra.mxu0 %v156
    %620 = vmatprep.subr.mxu0 0.0
    %621 = vmatpush1.msra.mxu0 %v157
    %622 = vmatprep.subr.mxu0 0.0
    %623 = vmatpush1.msra.mxu0 %v158
    %624 = vmatprep.subr.mxu0 0.0
    %625 = vmatpush1.msra.mxu0 %v159
    %626 = vmatprep.subr.mxu0 0.0
    %627 = vmatpush1.msra.mxu0 %v160
    %628 = vmatprep.subr.mxu0 0.0
    %629 = vmatpush1.msra.mxu0 %v161
    %630 = vmatprep.subr.mxu0 0.0
    %631 = vmatpush1.msra.mxu0 %v162
    %632 = vmatprep.subr.mxu0 0.0
    %633 = vmatpush1.msra.mxu0 %v163
    %634 = vmatprep.subr.mxu0 0.0
    %635 = vmatpush1.msra.mxu0 %v164
    %636 = vmatprep.subr.mxu0 0.0
    %637 = vmatpush1.msra.mxu0 %v165
    %638 = vmatprep.subr.mxu0 0.0
    %639 = vmatpush1.msra.mxu0 %v166
    %640 = vmatprep.subr.mxu0 0.0
    %641 = vmatpush1.msra.mxu0 %v167
    %642 = vmatprep.subr.mxu0 0.0
    %643 = vmatpush1.msra.mxu0 %v168
    %644 = vmatprep.subr.mxu0 0.0
    %645 = vmatpush1.msra.mxu0 %v169
    %646 = vmatprep.subr.mxu0 0.0
    %647 = vmatpush1.msra.mxu0 %v170
    %648 = vmatprep.subr.mxu0 0.0
    %649 = vmatpush1.msra.mxu0 %v171
    %650 = vmatprep.subr.mxu0 0.0
    %651 = vmatpush1.msra.mxu0 0.0
    %652 = vmatprep.subr.mxu0 0.0
    %653 = vmatpush1.msra.mxu0 0.0
    %654 = vmatprep.subr.mxu0 0.0
    %655 = vmatpush1.msra.mxu0 0.0
    %656 = vmatprep.subr.mxu0 0.0
    %657 = vmatpush1.msra.mxu0 0.0
    %658 = vmatprep.subr.mxu0 0.0
    %659 = vmatpush1.msra.mxu0 0.0
    %660 = vmatprep.subr.mxu0 0.0
    %661 = vmatpush1.msra.mxu0 0.0
    %662 = vmatprep.subr.mxu0 0.0
    %663 = vmatpush1.msra.mxu0 0.0
    %664 = vmatprep.subr.mxu0 0.0
    %665 = vmatpush1.msra.mxu0 0.0
    %666 = vmatprep.subr.mxu0 0.0
    %667 = vmatpush1.msra.mxu0 0.0
    %668 = vmatprep.subr.mxu0 0.0
    %669 = vmatpush1.msra.mxu0 0.0
    %670 = vmatprep.subr.mxu0 0.0
    %671 = vmatpush1.msra.mxu0 0.0
    %672 = vmatprep.subr.mxu0 0.0
    %673 = vmatpush1.msra.mxu0 0.0
    %674 = vmatprep.subr.mxu0 0.0
    %675 = vmatpush1.msra.mxu0 0.0
    %676 = vmatprep.subr.mxu0 0.0
    %677 = vmatpush1.msra.mxu0 0.0
    %678 = vmatprep.subr.mxu0 0.0
    %679 = vmatpush1.msra.mxu0 0.0
    %680 = vmatprep.subr.mxu0 0.0
    %681 = vmatpush1.msra.mxu0 0.0
    %682 = vmatprep.mubr.f32.mxu0 0.0
    %683 = vmatmul.mubr.f32.gmra.mrb[0].mxu0 %v617
    %v684 = vpop.f32.mrb[0].mxu0
    %v685 = vadd.f32 %v172, %v684
    %v686 = vpop.f32.mrb[0].mxu0
    %687 = vdwg.mxu0
    %688 = vst [vmem:[#allocation4 + $0x6] sm:$0x1] %v685
    %v689 = vld [vmem:[#allocation3 + $0x6] sm:$0x1]
    %v690 = vadd.f32 %v689, %v685
    %v691 = vtanh.pop %v690
    %692 = vmatprep.subr.mxu0 0.0
    %693 = vmatpush1.msra.mxu0 %v156
    %694 = vmatprep.subr.mxu0 0.0
    %695 = vmatpush1.msra.mxu0 %v157
    %696 = vmatprep.subr.mxu0 0.0
    %697 = vmatpush1.msra.mxu0 %v158
    %698 = vmatprep.subr.mxu0 0.0
    %699 = vmatpush1.msra.mxu0 %v159
    %700 = vmatprep.subr.mxu0 0.0
    %701 = vmatpush1.msra.mxu0 %v160
    %702 = vmatprep.subr.mxu0 0.0
    %703 = vmatpush1.msra.mxu0 %v161
    %704 = vmatprep.subr.mxu0 0.0
    %705 = vmatpush1.msra.mxu0 %v162
    %706 = vmatprep.subr.mxu0 0.0
    %707 = vmatpush1.msra.mxu0 %v163
    %708 = vmatprep.subr.mxu0 0.0
    %709 = vmatpush1.msra.mxu0 %v164
    %710 = vmatprep.subr.mxu0 0.0
    %711 = vmatpush1.msra.mxu0 %v165
    %712 = vmatprep.subr.mxu0 0.0
    %713 = vmatpush1.msra.mxu0 %v166
    %714 = vmatprep.subr.mxu0 0.0
    %715 = vmatpush1.msra.mxu0 %v167
    %716 = vmatprep.subr.mxu0 0.0
    %717 = vmatpush1.msra.mxu0 %v168
    %718 = vmatprep.subr.mxu0 0.0
    %719 = vmatpush1.msra.mxu0 %v169
    %720 = vmatprep.subr.mxu0 0.0
    %721 = vmatpush1.msra.mxu0 %v170
    %722 = vmatprep.subr.mxu0 0.0
    %723 = vmatpush1.msra.mxu0 %v171
    %724 = vmatprep.subr.mxu0 0.0
    %725 = vmatpush1.msra.mxu0 0.0
    %726 = vmatprep.subr.mxu0 0.0
    %727 = vmatpush1.msra.mxu0 0.0
    %728 = vmatprep.subr.mxu0 0.0
    %729 = vmatpush1.msra.mxu0 0.0
    %730 = vmatprep.subr.mxu0 0.0
    %731 = vmatpush1.msra.mxu0 0.0
    %732 = vmatprep.subr.mxu0 0.0
    %733 = vmatpush1.msra.mxu0 0.0
    %734 = vmatprep.subr.mxu0 0.0
    %735 = vmatpush1.msra.mxu0 0.0
    %736 = vmatprep.subr.mxu0 0.0
    %737 = vmatpush1.msra.mxu0 0.0
    %738 = vmatprep.subr.mxu0 0.0
    %739 = vmatpush1.msra.mxu0 0.0
    %740 = vmatprep.subr.mxu0 0.0
    %741 = vmatpush1.msra.mxu0 0.0
    %742 = vmatprep.subr.mxu0 0.0
    %743 = vmatpush1.msra.mxu0 0.0
    %744 = vmatprep.subr.mxu0 0.0
    %745 = vmatpush1.msra.mxu0 0.0
    %746 = vmatprep.subr.mxu0 0.0
    %747 = vmatpush1.msra.mxu0 0.0
    %748 = vmatprep.subr.mxu0 0.0
    %749 = vmatpush1.msra.mxu0 0.0
    %750 = vmatprep.subr.mxu0 0.0
    %751 = vmatpush1.msra.mxu0 0.0
    %752 = vmatprep.subr.mxu0 0.0
    %753 = vmatpush1.msra.mxu0 0.0
    %754 = vmatprep.subr.mxu0 0.0
    %755 = vmatpush1.msra.mxu0 0.0
    %756 = vmatprep.mubr.f32.mxu0 0.0
    %757 = vmatmul.mubr.f32.gmra.mrb[0].mxu0 %v691
    %v758 = vpop.f32.mrb[0].mxu0
    %v759 = vadd.f32 %v172, %v758
    %v760 = vpop.f32.mrb[0].mxu0
    %761 = vdwg.mxu0
    %762 = vst [vmem:[#allocation4 + $0x7] sm:$0x1] %v759
    %v763 = vld [vmem:[#allocation3 + $0x7] sm:$0x1]
    %v764 = vadd.f32 %v763, %v759
    %v765 = vtanh.pop %v764
    %766 = vst [vmem:[#allocation5] sm:$0x1] %v765
    %v767 = vld [vmem:[#allocation3] sm:$0xff]
    %v768 = vld [vmem:[#allocation3 + $0x8] sm:$0xff]
    %v769 = vld [vmem:[#allocation4] sm:$0xff]
    %v770 = vadd.f32 %v767, %v769
    %v771 = vadd.f32 %v768, %v769
    %v772 = vtanh.pop %v770
    %v773 = vtanh.pop %v771
    %774 = vst [vmem:[#allocation11] sm:$0xff] %v772
    %775 = vst [vmem:[#allocation11 + $0x8] sm:$0xff] %v773
    // Predicated region
    $region30: #{tpu_custom_call.1} parent=1 // pred_check
      %p776 = pneg %p49
    $region31: #{tpu_custom_call.1} parent=1 // pred_check_branch
      %778 = sbr.rel (%p776) target = $region33
    $region32: #{tpu_custom_call.1} parent=1 // pred_region
      %v781 = vrot.slane %v773, 7
      %784 = vst [vmem:[#allocation12 - $0x7] sm:$0x80] %v772
      %785 = vst [vmem:[#allocation12 + $0x1] sm:$0x1] %v781
    $region33: #{tpu_custom_call.1} parent=1 // pred_fallthru
      _
    // Predicated region
    $region34: #{tpu_custom_call.1} parent=1 // pred_check
      _
    $region35: #{tpu_custom_call.1} parent=1 // pred_check_branch
      %787 = sbr.rel (0) target = $region37
    $region36: #{tpu_custom_call.1} parent=1 // pred_region
      %s789 = ssub.s32 256, 256
      %790 = vsyncadd [#allocation8], %s789
      %s791 = sshll.u32 [#allocation11], 4
      %s792 = int_to_ptr.vmem [resolvable:$true] %s791
      %797 = dma.vmem_to_hbm [thread:$0]  %s792, 256, %s4, [#allocation8], 128, 128, 8
    $region37: #{tpu_custom_call.1} parent=1 // pred_fallthru
      _
    // Predicated region
    $region38: #{tpu_custom_call.1} parent=1 // pred_check
      _
    $region39: #{tpu_custom_call.1} parent=1 // pred_check_branch
      %799 = sbr.rel (0) target = $region41
    $region40: #{tpu_custom_call.1} parent=1 // pred_region
      %s801 = ssub.s32 32, 32
      %802 = vsyncadd [#allocation13], %s801
      %s804 = sshll.u32 [#allocation12], 4
      %s805 = int_to_ptr.vmem [resolvable:$true] %s804
      %807 = dma.vmem_to_hbm [thread:$0]  %s805, 32, %s5, [#allocation13]
    $region41: #{tpu_custom_call.1} parent=1 // pred_fallthru
      _
    // Predicated region
    $region42: #{tpu_custom_call.1} parent=1 // pred_check
      _
    $region43: #{tpu_custom_call.1} parent=1 // pred_check_branch
      %809 = sbr.rel (0) target = $region45
    $region44: #{tpu_custom_call.1} parent=1 // pred_region
      %810 = dma.done [#allocation8], 256
    $region45: #{tpu_custom_call.1} parent=1 // pred_fallthru
      _
    // Predicated region
    $region46: #{tpu_custom_call.1} parent=1 // pred_check
      _
    $region47: #{tpu_custom_call.1} parent=1 // pred_check_branch
      %812 = sbr.rel (0) target = $region49
    $region48: #{tpu_custom_call.1} parent=1 // pred_region
      %813 = dma.done [#allocation13], 32
    $region49: #{tpu_custom_call.1} parent=1 // pred_fallthru
      _
    %814 = vsyncpa [#allocation7], 1
    %815 = vsyncpa [#allocation10], 1
    %816 = vsyncpa [#allocation8], 1
    %817 = vsyncpa [#allocation13], 1

</llo_original>
